<compile_context>
chip_gen: v7x
topology: tpu7x:2x2x1
jax: 0.10.0
libtpu: 0.0.40
codegen_flags: <defaults>
</compile_context>

<pallas_src>
import jax
import jax.numpy as jnp
from jax.experimental import pallas as pl
from jax.experimental.pallas import tpu as pltpu

_MiB = 1024 * 1024


def _cdiv(a, b):
    return -(-a // b)


# ----------------------------------------------------------------------------
# Per-chip tiling / VMEM configuration.
# Returns (block_budget_bytes, vmem_limit_bytes, min_grid_blocks, vmem_cap).
# ----------------------------------------------------------------------------
def _chip_config():
    kind = ""
    vmem_cap = None
    try:
        kind = jax.devices()[0].device_kind.lower()
    except Exception:
        pass
    try:
        vmem_cap = int(getattr(pltpu.get_tpu_info(), "vmem_capacity_bytes", 0)) or None
    except Exception:
        pass
    # v7x: 64 MiB VMEM per TensorCore, 2 TCs/chip, 3.2 TB/s HBM -> bigger
    # blocks amortize the ~0.35us per-grid-step overhead, and we force >= 2
    # grid blocks so both TensorCores get work.
    if "v7" in kind or (vmem_cap is not None and vmem_cap <= 64 * _MiB):
        return 6 * _MiB, 48 * _MiB, 2, (vmem_cap or 64 * _MiB)
    # v5 family: 128 MiB physical VMEM but only a 16 MiB default scoped limit;
    # already near roofline at modest tiles -> moderate budget, explicit limit.
    if "v5" in kind:
        return 4 * _MiB, 32 * _MiB, 1, (vmem_cap or 128 * _MiB)
    # v6e (and other 128 MiB-VMEM chips): large blocks under a 64 MiB limit.
    return 8 * _MiB, 64 * _MiB, 1, (vmem_cap or 128 * _MiB)


def _choose_tiles(R, S, itemsize, block_budget_bytes, min_grid_blocks):
    """Pick (tile_r, tile_s): sublane-legal row tile, lane-dense column tile."""
    # Rows (sublane axis): full extent when small (always legal), else a
    # multiple-of-8 tile; the cdiv grid handles any remainder block.
    tile_r = R if R <= 256 else 256
    # Lanes: largest multiple of 128 fitting the per-block budget, or the
    # full extent if it already fits (full extent is always legal).
    max_s = max(128, block_budget_bytes // max(1, tile_r * itemsize))
    tile_s = S if S <= max_s else (max_s // 128) * 128
    # v7x shards the "parallel" grid axes over 2 TensorCores: make sure there
    # are at least two blocks so neither core sits idle.
    if min_grid_blocks > 1 and _cdiv(R, tile_r) * _cdiv(S, tile_s) < min_grid_blocks:
        half_r = ((_cdiv(R, 2) + 7) // 8) * 8
        half_s = ((_cdiv(S, 2) + 127) // 128) * 128
        if 8 <= half_r < R:        # prefer splitting rows (keeps full lane width)
            tile_r = half_r
        elif 128 <= half_s < S:
            tile_s = half_s
        # else: slab too small to split legally; a single block is fine.
    return tile_r, tile_s


# ----------------------------------------------------------------------------
# Kernel 1: fused conditioning MLP (tiny, latency-bound)
#   y_red = y @ Wl + bl
#   gamma = relu(y_red @ Wg1 + bg1) @ Wg2 + bg2
#   beta  = relu(y_red @ Wb1 + bb1) @ Wb2 + bb2
# Weights arrive pre-transposed (in, out); biases as (1, out) rows.  All f32.
# ----------------------------------------------------------------------------
def _mlp_kernel(y_ref, wl_ref, bl_ref,
                wg1_ref, bg1_ref, wg2_ref, bg2_ref,
                wb1_ref, bb1_ref, wb2_ref, bb2_ref,
                g_ref, b_ref):
    y_red = (jnp.dot(y_ref[...], wl_ref[...],
                     preferred_element_type=jnp.float32) + bl_ref[...])
    hg = jnp.maximum(
        jnp.dot(y_red, wg1_ref[...], preferred_element_type=jnp.float32)
        + bg1_ref[...], 0.0)
    g_ref[...] = (jnp.dot(hg, wg2_ref[...],
                          preferred_element_type=jnp.float32) + bg2_ref[...])
    hb = jnp.maximum(
        jnp.dot(y_red, wb1_ref[...], preferred_element_type=jnp.float32)
        + bb1_ref[...], 0.0)
    b_ref[...] = (jnp.dot(hb, wb2_ref[...],
                          preferred_element_type=jnp.float32) + bb2_ref[...])


# ----------------------------------------------------------------------------
# Kernel 2: streaming affine  out[r, s] = gamma[r] * x[r, s] + beta[r]
# gb is a packed (TILE_R, 2) f32 column pair: gb[:, 0]=gamma, gb[:, 1]=beta.
# Math in f32, output cast to x's dtype (handles bf16 inputs correctly).
# ----------------------------------------------------------------------------
def _affine_kernel(x_ref, gb_ref, o_ref):
    x = x_ref[...].astype(jnp.float32)
    gb = gb_ref[...]                    # (TILE_R, 2)
    g = gb[:, 0:1]                      # (TILE_R, 1) -> broadcasts over lanes
    b = gb[:, 1:2]
    o_ref[...] = (g * x + b).astype(o_ref.dtype)


# ----------------------------------------------------------------------------
# One-time parameter preparation (hoisted out of the per-call forward).
# PyTorch Linear weights are (out, in); we pre-transpose to (in, out).
# ----------------------------------------------------------------------------
def prepare_params(params):
    f32 = jnp.float32
    return {
        "wl":  jnp.transpose(params["lin_w"]).astype(f32),
        "bl":  params["lin_b"].reshape(1, -1).astype(f32),
        "wg1": jnp.transpose(params["g1_w"]).astype(f32),
        "bg1": params["g1_b"].reshape(1, -1).astype(f32),
        "wg2": jnp.transpose(params["g2_w"]).astype(f32),
        "bg2": params["g2_b"].reshape(1, -1).astype(f32),
        "wb1": jnp.transpose(params["b1_w"]).astype(f32),
        "bb1": params["b1_b"].reshape(1, -1).astype(f32),
        "wb2": jnp.transpose(params["b2_w"]).astype(f32),
        "bb2": params["b2_b"].reshape(1, -1).astype(f32),
    }


def affine3d_forward(prepped, x, y, *, block_budget_bytes=None,
                     vmem_limit_bytes=None):
    N, C, D, H, W = x.shape
    S = D * H * W
    R = N * C
    f32 = jnp.float32

    # ---- tiny conditioning MLP: one fused Pallas kernel, full arrays in VMEM
    gamma, beta = pl.pallas_call(
        _mlp_kernel,
        out_shape=(jax.ShapeDtypeStruct((N, C), f32),
                   jax.ShapeDtypeStruct((N, C), f32)),
    )(y.astype(f32), prepped["wl"], prepped["bl"],
      prepped["wg1"], prepped["bg1"], prepped["wg2"], prepped["bg2"],
      prepped["wb1"], prepped["bb1"], prepped["wb2"], prepped["bb2"])

    # Pack gamma/beta into a single (R, 2) column pair: one side-DMA per row
    # tile instead of two, half the lane-padded side-buffer VMEM.
    gb = jnp.stack([gamma, beta], axis=-1).reshape(R, 2)

    # ---- per-chip tiling / VMEM budget ----
    cfg_budget, cfg_limit, min_blocks, vmem_cap = _chip_config()
    budget = block_budget_bytes if block_budget_bytes is not None else cfg_budget
    if vmem_limit_bytes is None:
        # Couple the scoped limit to the block budget (double-buffered x + out
        # ~ 4x block, plus headroom), but stay below physical VMEM.
        vmem_limit_bytes = min(max(cfg_limit, 4 * budget + 8 * _MiB),
                               vmem_cap - 8 * _MiB)

    itemsize = jnp.dtype(x.dtype).itemsize
    tile_r, tile_s = _choose_tiles(R, S, itemsize, budget, min_blocks)

    # ---- streaming affine over the flattened (N*C, S) slab ----
    x2 = x.reshape(R, S)
    out = pl.pallas_call(
        _affine_kernel,
        out_shape=jax.ShapeDtypeStruct((R, S), x.dtype),
        grid=(_cdiv(R, tile_r), _cdiv(S, tile_s)),
        in_specs=[pl.BlockSpec((tile_r, tile_s), lambda r, s: (r, s)),
                  pl.BlockSpec((tile_r, 2), lambda r, s: (r, 0))],
        out_specs=pl.BlockSpec((tile_r, tile_s), lambda r, s: (r, s)),
        compiler_params=pltpu.CompilerParams(
            dimension_semantics=("parallel", "parallel"),
            vmem_limit_bytes=vmem_limit_bytes),
    )(x2, gb)

    return out.reshape(N, C, D, H, W)


# ----------------------------------------------------------------------------
# Parameter construction (deterministic, in-script).
# Shapes follow Affine3D.__init__ with PyTorch Linear weight layout (out, in).
# module_init=True reproduces Affine3D._initialize exactly (identity at init);
# module_init=False uses small random values to exercise the matmul path.
# ----------------------------------------------------------------------------
def init_params(key, cond_dim, num_features, clip_dim=512, nz=0, module_init=True):
    ks = jax.random.split(key, 10)

    def w(k, shape, scale=0.05):
        return scale * jax.random.normal(k, shape, jnp.float32)

    p = {
        "lin_w": w(ks[0], (cond_dim, clip_dim + nz)),
        "lin_b": w(ks[1], (cond_dim,)),
        "g1_w": w(ks[2], (num_features, cond_dim)),
        "g1_b": w(ks[3], (num_features,)),
        "b1_w": w(ks[4], (num_features, cond_dim)),
        "b1_b": w(ks[5], (num_features,)),
    }
    if module_init:
        p["g2_w"] = jnp.zeros((num_features, num_features), jnp.float32)
        p["g2_b"] = jnp.ones((num_features,), jnp.float32)
        p["b2_w"] = jnp.zeros((num_features, num_features), jnp.float32)
        p["b2_b"] = jnp.zeros((num_features,), jnp.float32)
    else:
        p["g2_w"] = w(ks[6], (num_features, num_features))
        p["g2_b"] = w(ks[7], (num_features,))
        p["b2_w"] = w(ks[8], (num_features, num_features))
        p["b2_b"] = w(ks[9], (num_features,))
    return p


def reference_forward(params, x, y):
    y_red = y @ params["lin_w"].T + params["lin_b"]
    g = (jnp.maximum(y_red @ params["g1_w"].T + params["g1_b"], 0.0)
         @ params["g2_w"].T + params["g2_b"])
    b = (jnp.maximum(y_red @ params["b1_w"].T + params["b1_b"], 0.0)
         @ params["b2_w"].T + params["b2_b"])
    return (g[:, :, None, None, None] * x.astype(jnp.float32)
            + b[:, :, None, None, None]).astype(x.dtype)


if __name__ == "__main__":
    key = jax.random.PRNGKey(0)
    N, C = 2, 8               # batch, num_features (channels)
    D = H = W = 8             # 3D spatial dims
    cond_dim = 32
    clip_dim = 512
    nz = 0

    kx, ky, kp = jax.random.split(key, 3)
    x = jax.random.normal(kx, (N, C, D, H, W), jnp.float32)
    y = jax.random.normal(ky, (N, clip_dim + nz), jnp.float32)

    params_module = init_params(kp, cond_dim, C, clip_dim, nz, module_init=True)
    params_random = init_params(kp, cond_dim, C, clip_dim, nz, module_init=False)

    # 1) module-default init (identity affine) and 2) random init, default tiles
    for params in (params_module, params_random):
        prepped = prepare_params(params)
        out = affine3d_forward(prepped, x, y)
        jax.block_until_ready(out)
        ref = reference_forward(params, x, y)
        assert out.shape == x.shape and out.dtype == x.dtype
        assert jnp.allclose(out, ref, atol=1e-4, rtol=1e-4), "mismatch vs reference"

    # 3) odd spatial size + tiny per-block budget forces S-tiling with a
    #    partial final lane tile (exercises the cdiv grid / masked block path).
    x_odd = jax.random.normal(kx, (N, C, 4, 6, 9), jnp.float32)   # S = 216
    prepped = prepare_params(params_random)
    out = affine3d_forward(prepped, x_odd, y, block_budget_bytes=8 * 1024)
    jax.block_until_ready(out)
    ref = reference_forward(params_random, x_odd, y)
    assert jnp.allclose(out, ref, atol=1e-4, rtol=1e-4), "tiled mismatch vs reference"

    print("KERNEL_OK")
</pallas_src>

<mosaic_0001>
module attributes {stable_mosaic.version = 11 : i64} {
  func.func @_mlp_kernel(%arg0: memref<2x512xf32, #tpu.memory_space<vmem>>, %arg1: memref<512x32xf32, #tpu.memory_space<vmem>>, %arg2: memref<1x32xf32, #tpu.memory_space<vmem>>, %arg3: memref<32x8xf32, #tpu.memory_space<vmem>>, %arg4: memref<1x8xf32, #tpu.memory_space<vmem>>, %arg5: memref<8x8xf32, #tpu.memory_space<vmem>>, %arg6: memref<1x8xf32, #tpu.memory_space<vmem>>, %arg7: memref<32x8xf32, #tpu.memory_space<vmem>>, %arg8: memref<1x8xf32, #tpu.memory_space<vmem>>, %arg9: memref<8x8xf32, #tpu.memory_space<vmem>>, %arg10: memref<1x8xf32, #tpu.memory_space<vmem>>, %arg11: memref<2x8xf32, #tpu.memory_space<vmem>>, %arg12: memref<2x8xf32, #tpu.memory_space<vmem>>) attributes {dimension_semantics = [], scalar_prefetch = 0 : i64, scratch_operands = 0 : i64, tpu.core_type = #tpu.core_type<tc>} {
    %c0 = arith.constant 0 : index
    %c0_0 = arith.constant 0 : index
    %0 = vector.load %arg0[%c0, %c0_0] : memref<2x512xf32, #tpu.memory_space<vmem>>, vector<2x512xf32>
    %c0_1 = arith.constant 0 : index
    %c0_2 = arith.constant 0 : index
    %1 = vector.load %arg1[%c0_1, %c0_2] : memref<512x32xf32, #tpu.memory_space<vmem>>, vector<512x32xf32>
    %cst = arith.constant dense<0.000000e+00> : vector<2x32xf32>
    %2 = tpu.matmul %0, %1, %cst {dimension_numbers = #tpu.dot_dimension_numbers<[1], [0], [0], [1], [0, 0, 1, 1], [], []>} : vector<2x512xf32>, vector<512x32xf32>, vector<2x32xf32> -> vector<2x32xf32>
    %c0_3 = arith.constant 0 : index
    %c0_4 = arith.constant 0 : index
    %3 = vector.load %arg2[%c0_3, %c0_4] : memref<1x32xf32, #tpu.memory_space<vmem>>, vector<1x32xf32>
    %4 = vector.broadcast %3 : vector<1x32xf32> to vector<2x32xf32>
    %5 = arith.addf %2, %4 : vector<2x32xf32>
    %c0_5 = arith.constant 0 : index
    %c0_6 = arith.constant 0 : index
    %6 = vector.load %arg3[%c0_5, %c0_6] : memref<32x8xf32, #tpu.memory_space<vmem>>, vector<32x8xf32>
    %cst_7 = arith.constant dense<0.000000e+00> : vector<2x8xf32>
    %7 = tpu.matmul %5, %6, %cst_7 {dimension_numbers = #tpu.dot_dimension_numbers<[1], [0], [0], [1], [0, 0, 1, 1], [], []>} : vector<2x32xf32>, vector<32x8xf32>, vector<2x8xf32> -> vector<2x8xf32>
    %c0_8 = arith.constant 0 : index
    %c0_9 = arith.constant 0 : index
    %8 = vector.load %arg4[%c0_8, %c0_9] : memref<1x8xf32, #tpu.memory_space<vmem>>, vector<1x8xf32>
    %9 = vector.broadcast %8 : vector<1x8xf32> to vector<2x8xf32>
    %10 = arith.addf %7, %9 : vector<2x8xf32>
    %cst_10 = arith.constant 0.000000e+00 : f32
    %11 = vector.broadcast %cst_10 : f32 to vector<2x8xf32>
    %12 = arith.maximumf %10, %11 : vector<2x8xf32>
    %c0_11 = arith.constant 0 : index
    %c0_12 = arith.constant 0 : index
    %13 = vector.load %arg5[%c0_11, %c0_12] : memref<8x8xf32, #tpu.memory_space<vmem>>, vector<8x8xf32>
    %cst_13 = arith.constant dense<0.000000e+00> : vector<2x8xf32>
    %14 = tpu.matmul %12, %13, %cst_13 {dimension_numbers = #tpu.dot_dimension_numbers<[1], [0], [0], [1], [0, 0, 1, 1], [], []>} : vector<2x8xf32>, vector<8x8xf32>, vector<2x8xf32> -> vector<2x8xf32>
    %c0_14 = arith.constant 0 : index
    %c0_15 = arith.constant 0 : index
    %15 = vector.load %arg6[%c0_14, %c0_15] : memref<1x8xf32, #tpu.memory_space<vmem>>, vector<1x8xf32>
    %16 = vector.broadcast %15 : vector<1x8xf32> to vector<2x8xf32>
    %17 = arith.addf %14, %16 : vector<2x8xf32>
    %c0_16 = arith.constant 0 : index
    %c0_17 = arith.constant 0 : index
    %18 = vector.load %arg11[%c0_16, %c0_17] : memref<2x8xf32, #tpu.memory_space<vmem>>, vector<2x8xf32>
    tpu.vector_store %arg11[%c0_16, %c0_17], %17 {strides = array<i32>} : memref<2x8xf32, #tpu.memory_space<vmem>>, vector<2x8xf32>,
    %c0_18 = arith.constant 0 : index
    %c0_19 = arith.constant 0 : index
    %19 = vector.load %arg7[%c0_18, %c0_19] : memref<32x8xf32, #tpu.memory_space<vmem>>, vector<32x8xf32>
    %cst_20 = arith.constant dense<0.000000e+00> : vector<2x8xf32>
    %20 = tpu.matmul %5, %19, %cst_20 {dimension_numbers = #tpu.dot_dimension_numbers<[1], [0], [0], [1], [0, 0, 1, 1], [], []>} : vector<2x32xf32>, vector<32x8xf32>, vector<2x8xf32> -> vector<2x8xf32>
    %c0_21 = arith.constant 0 : index
    %c0_22 = arith.constant 0 : index
    %21 = vector.load %arg8[%c0_21, %c0_22] : memref<1x8xf32, #tpu.memory_space<vmem>>, vector<1x8xf32>
    %22 = vector.broadcast %21 : vector<1x8xf32> to vector<2x8xf32>
    %23 = arith.addf %20, %22 : vector<2x8xf32>
    %cst_23 = arith.constant 0.000000e+00 : f32
    %24 = vector.broadcast %cst_23 : f32 to vector<2x8xf32>
    %25 = arith.maximumf %23, %24 : vector<2x8xf32>
    %c0_24 = arith.constant 0 : index
    %c0_25 = arith.constant 0 : index
    %26 = vector.load %arg9[%c0_24, %c0_25] : memref<8x8xf32, #tpu.memory_space<vmem>>, vector<8x8xf32>
    %cst_26 = arith.constant dense<0.000000e+00> : vector<2x8xf32>
    %27 = tpu.matmul %25, %26, %cst_26 {dimension_numbers = #tpu.dot_dimension_numbers<[1], [0], [0], [1], [0, 0, 1, 1], [], []>} : vector<2x8xf32>, vector<8x8xf32>, vector<2x8xf32> -> vector<2x8xf32>
    %c0_27 = arith.constant 0 : index
    %c0_28 = arith.constant 0 : index
    %28 = vector.load %arg10[%c0_27, %c0_28] : memref<1x8xf32, #tpu.memory_space<vmem>>, vector<1x8xf32>
    %29 = vector.broadcast %28 : vector<1x8xf32> to vector<2x8xf32>
    %30 = arith.addf %27, %29 : vector<2x8xf32>
    %c0_29 = arith.constant 0 : index
    %c0_30 = arith.constant 0 : index
    %31 = vector.load %arg12[%c0_29, %c0_30] : memref<2x8xf32, #tpu.memory_space<vmem>>, vector<2x8xf32>
    tpu.vector_store %arg12[%c0_29, %c0_30], %30 {strides = array<i32>} : memref<2x8xf32, #tpu.memory_space<vmem>>, vector<2x8xf32>,
    return
  }
}

</mosaic_0001>

<llo_original>
// kernel: tpu_custom_call.1
$region0: #{tpu_custom_call.1}
  #allocation0 [shape = 'u32[]', space=smem, size = 0x4, offset = 0x4, fixed_abs, tag = 'smem constant byte address 0x4 - core index']
  #allocation1 [shape = 'u32[144,128]{1,0:T(1,128)}', space=vmem, size = 0x12000, scoped, tag = 'internal scratch']
  %s0 = inlined_call_operand.vmem [shape: f32[2,512], index: 0, kind: input, shape index: {}]
  %s1 = inlined_call_operand.vmem [shape: f32[512,32], index: 1, kind: input, shape index: {}]
  %s2 = inlined_call_operand.vmem [shape: f32[1,32], index: 2, kind: input, shape index: {}]
  %s3 = inlined_call_operand.vmem [shape: f32[32,8], index: 3, kind: input, shape index: {}]
  %s4 = inlined_call_operand.vmem [shape: f32[1,8], index: 4, kind: input, shape index: {}]
  %s5 = inlined_call_operand.vmem [shape: f32[8,8], index: 5, kind: input, shape index: {}]
  %s6 = inlined_call_operand.vmem [shape: f32[1,8], index: 6, kind: input, shape index: {}]
  %s7 = inlined_call_operand.vmem [shape: f32[32,8], index: 7, kind: input, shape index: {}]
  %s8 = inlined_call_operand.vmem [shape: f32[1,8], index: 8, kind: input, shape index: {}]
  %s9 = inlined_call_operand.vmem [shape: f32[8,8], index: 9, kind: input, shape index: {}]
  %s10 = inlined_call_operand.vmem [shape: f32[1,8], index: 10, kind: input, shape index: {}]
  %s11 = inlined_call_operand.hbm [shape: f32[2,8], index: 11, kind: output, shape index: {0}]
  %s12 = inlined_call_operand.hbm [shape: f32[2,8], index: 12, kind: output, shape index: {1}]
  %13 = xla_tuple %s11, %s12
  %s14 = sld [smem:[#allocation0]]
  $region62: #{tpu_custom_call.1} parent=0
    _
  %s16 = ssub.s32 1, %s14
  %s17 = scalar_select 0, %s16, %s14
  $region1: #{tpu_custom_call.1} parent=0
    #allocation2 [shape = 'u8[1024]{0}', space=vmem, size = 0x400, scoped, tag = 'output window, operand 0, single buffered']
    #allocation3 [shape = 's32[1]{0}', space=sflag, size = 0x4, scoped, tag = 'scoped memory for tpu_custom_call.1']
    #allocation4 [shape = 'u8[1024]{0}', space=vmem, size = 0x400, scoped, tag = 'output window, operand 1, single buffered']
    #allocation5 [shape = 's32[1]{0}', space=sflag, size = 0x4, scoped, tag = 'scoped memory for tpu_custom_call.1']
    %18 = vsyncpa [#allocation3], 0
    %19 = vsyncpa [#allocation5], 0
    // Predicated region
    $region2: #{tpu_custom_call.1} parent=1 // pred_check
      _
    $region3: #{tpu_custom_call.1} parent=1 // pred_check_branch
      %21 = sbr.rel (0) target = $region5
    $region4: #{tpu_custom_call.1} parent=1 // pred_region
      _
    $region5: #{tpu_custom_call.1} parent=1 // pred_fallthru
      _
    // Predicated region
    $region6: #{tpu_custom_call.1} parent=1 // pred_check
      _
    $region7: #{tpu_custom_call.1} parent=1 // pred_check_branch
      %23 = sbr.rel (0) target = $region9
    $region8: #{tpu_custom_call.1} parent=1 // pred_region
      _
    $region9: #{tpu_custom_call.1} parent=1 // pred_fallthru
      _
    // Predicated region
    $region10: #{tpu_custom_call.1} parent=1 // pred_check
      _
    $region11: #{tpu_custom_call.1} parent=1 // pred_check_branch
      %25 = sbr.rel (0) target = $region13
    $region12: #{tpu_custom_call.1} parent=1 // pred_region
      _
    $region13: #{tpu_custom_call.1} parent=1 // pred_fallthru
      _
    // Predicated region
    $region14: #{tpu_custom_call.1} parent=1 // pred_check
      _
    $region15: #{tpu_custom_call.1} parent=1 // pred_check_branch
      %27 = sbr.rel (0) target = $region17
    $region16: #{tpu_custom_call.1} parent=1 // pred_region
      _
    $region17: #{tpu_custom_call.1} parent=1 // pred_fallthru
      _
    // Predicated region
    $region18: #{tpu_custom_call.1} parent=1 // pred_check
      _
    $region19: #{tpu_custom_call.1} parent=1 // pred_check_branch
      %29 = sbr.rel (0) target = $region21
    $region20: #{tpu_custom_call.1} parent=1 // pred_region
      _
    $region21: #{tpu_custom_call.1} parent=1 // pred_fallthru
      _
    // Predicated region
    $region22: #{tpu_custom_call.1} parent=1 // pred_check
      _
    $region23: #{tpu_custom_call.1} parent=1 // pred_check_branch
      %31 = sbr.rel (0) target = $region25
    $region24: #{tpu_custom_call.1} parent=1 // pred_region
      _
    $region25: #{tpu_custom_call.1} parent=1 // pred_fallthru
      _
    // Predicated region
    $region26: #{tpu_custom_call.1} parent=1 // pred_check
      _
    $region27: #{tpu_custom_call.1} parent=1 // pred_check_branch
      %33 = sbr.rel (0) target = $region29
    $region28: #{tpu_custom_call.1} parent=1 // pred_region
      _
    $region29: #{tpu_custom_call.1} parent=1 // pred_fallthru
      _
    // Predicated region
    $region30: #{tpu_custom_call.1} parent=1 // pred_check
      _
    $region31: #{tpu_custom_call.1} parent=1 // pred_check_branch
      %35 = sbr.rel (0) target = $region33
    $region32: #{tpu_custom_call.1} parent=1 // pred_region
      _
    $region33: #{tpu_custom_call.1} parent=1 // pred_fallthru
      _
    // Predicated region
    $region34: #{tpu_custom_call.1} parent=1 // pred_check
      _
    $region35: #{tpu_custom_call.1} parent=1 // pred_check_branch
      %37 = sbr.rel (0) target = $region37
    $region36: #{tpu_custom_call.1} parent=1 // pred_region
      _
    $region37: #{tpu_custom_call.1} parent=1 // pred_fallthru
      _
    // Predicated region
    $region38: #{tpu_custom_call.1} parent=1 // pred_check
      _
    $region39: #{tpu_custom_call.1} parent=1 // pred_check_branch
      %39 = sbr.rel (0) target = $region41
    $region40: #{tpu_custom_call.1} parent=1 // pred_region
      _
    $region41: #{tpu_custom_call.1} parent=1 // pred_fallthru
      _
    // Predicated region
    $region42: #{tpu_custom_call.1} parent=1 // pred_check
      _
    $region43: #{tpu_custom_call.1} parent=1 // pred_check_branch
      %41 = sbr.rel (0) target = $region45
    $region44: #{tpu_custom_call.1} parent=1 // pred_region
      _
    $region45: #{tpu_custom_call.1} parent=1 // pred_fallthru
      _
    %v42 = vld [vmem:[%s0] sm:$0xff]
    %v43 = vld [vmem:[%s1] sm:$0xff]
    %v44 = vld [vmem:[%s1 + $0x8] sm:$0xff]
    %v45 = vld [vmem:[%s1 + $0x10] sm:$0xff]
    %v46 = vld [vmem:[%s1 + $0x18] sm:$0xff]
    %v47 = vld [vmem:[%s1 + $0x20] sm:$0xff]
    %v48 = vld [vmem:[%s1 + $0x28] sm:$0xff]
    %v49 = vld [vmem:[%s1 + $0x30] sm:$0xff]
    %v50 = vld [vmem:[%s1 + $0x38] sm:$0xff]
    %v51 = vld [vmem:[%s1 + $0x40] sm:$0xff]
    %v52 = vld [vmem:[%s1 + $0x48] sm:$0xff]
    %v53 = vld [vmem:[%s1 + $0x50] sm:$0xff]
    %v54 = vld [vmem:[%s1 + $0x58] sm:$0xff]
    %v55 = vld [vmem:[%s1 + $0x60] sm:$0xff]
    %v56 = vld [vmem:[%s1 + $0x68] sm:$0xff]
    %v57 = vld [vmem:[%s1 + $0x70] sm:$0xff]
    %v58 = vld [vmem:[%s1 + $0x78] sm:$0xff]
    %v59 = vld [vmem:[%s1 + $0x80] sm:$0xff]
    %v60 = vld [vmem:[%s1 + $0x88] sm:$0xff]
    %v61 = vld [vmem:[%s1 + $0x90] sm:$0xff]
    %v62 = vld [vmem:[%s1 + $0x98] sm:$0xff]
    %v63 = vld [vmem:[%s1 + $0xa0] sm:$0xff]
    %v64 = vld [vmem:[%s1 + $0xa8] sm:$0xff]
    %v65 = vld [vmem:[%s1 + $0xb0] sm:$0xff]
    %v66 = vld [vmem:[%s1 + $0xb8] sm:$0xff]
    %v67 = vld [vmem:[%s1 + $0xc0] sm:$0xff]
    %v68 = vld [vmem:[%s1 + $0xc8] sm:$0xff]
    %v69 = vld [vmem:[%s1 + $0xd0] sm:$0xff]
    %v70 = vld [vmem:[%s1 + $0xd8] sm:$0xff]
    %v71 = vld [vmem:[%s1 + $0xe0] sm:$0xff]
    %v72 = vld [vmem:[%s1 + $0xe8] sm:$0xff]
    %v73 = vld [vmem:[%s1 + $0xf0] sm:$0xff]
    %v74 = vld [vmem:[%s1 + $0xf8] sm:$0xff]
    %v75 = vld [vmem:[%s1 + $0x100] sm:$0xff]
    %v76 = vld [vmem:[%s1 + $0x108] sm:$0xff]
    %v77 = vld [vmem:[%s1 + $0x110] sm:$0xff]
    %v78 = vld [vmem:[%s1 + $0x118] sm:$0xff]
    %v79 = vld [vmem:[%s1 + $0x120] sm:$0xff]
    %v80 = vld [vmem:[%s1 + $0x128] sm:$0xff]
    %v81 = vld [vmem:[%s1 + $0x130] sm:$0xff]
    %v82 = vld [vmem:[%s1 + $0x138] sm:$0xff]
    %v83 = vld [vmem:[%s1 + $0x140] sm:$0xff]
    %v84 = vld [vmem:[%s1 + $0x148] sm:$0xff]
    %v85 = vld [vmem:[%s1 + $0x150] sm:$0xff]
    %v86 = vld [vmem:[%s1 + $0x158] sm:$0xff]
    %v87 = vld [vmem:[%s1 + $0x160] sm:$0xff]
    %v88 = vld [vmem:[%s1 + $0x168] sm:$0xff]
    %v89 = vld [vmem:[%s1 + $0x170] sm:$0xff]
    %v90 = vld [vmem:[%s1 + $0x178] sm:$0xff]
    %v91 = vld [vmem:[%s1 + $0x180] sm:$0xff]
    %v92 = vld [vmem:[%s1 + $0x188] sm:$0xff]
    %v93 = vld [vmem:[%s1 + $0x190] sm:$0xff]
    %v94 = vld [vmem:[%s1 + $0x198] sm:$0xff]
    %v95 = vld [vmem:[%s1 + $0x1a0] sm:$0xff]
    %v96 = vld [vmem:[%s1 + $0x1a8] sm:$0xff]
    %v97 = vld [vmem:[%s1 + $0x1b0] sm:$0xff]
    %v98 = vld [vmem:[%s1 + $0x1b8] sm:$0xff]
    %v99 = vld [vmem:[%s1 + $0x1c0] sm:$0xff]
    %v100 = vld [vmem:[%s1 + $0x1c8] sm:$0xff]
    %v101 = vld [vmem:[%s1 + $0x1d0] sm:$0xff]
    %v102 = vld [vmem:[%s1 + $0x1d8] sm:$0xff]
    %v103 = vld [vmem:[%s1 + $0x1e0] sm:$0xff]
    %v104 = vld [vmem:[%s1 + $0x1e8] sm:$0xff]
    %v105 = vld [vmem:[%s1 + $0x1f0] sm:$0xff]
    %v106 = vld [vmem:[%s1 + $0x1f8] sm:$0xff]
    %v107 = vld [vmem:[%s2] sm:$0x1]
    %v109 = vlaneseq
    %v110 = vshrl.u32 %v109, 7
    %v111 = vsub.s32 0, %v110
    %v112 = vrot.slane %v107, %v111
    %v115 = vcombine.high %v42, %v42
    %v117 = vunpack.c.l.s4 1983009808
    %v118 = vunpack.c.0.s8 %v117
    %v119 = vlaneseq
    %v120 = vshrl.u32 %v119, 7
    %v121 = vsub.s32 %v118, %v120
    %v122 = vrot.slane %v42, %v121
    %v124 = vunpack.c.l.s4 1983009808
    %v125 = vunpack.c.0.s8 %v124
    %v126 = vlaneseq
    %v127 = vshrl.u32 %v126, 7
    %v128 = vsub.s32 %v125, %v127
    %v129 = vrot.slane %v115, %v128
    %v130 = vcombine.high %v122, %v122
    %v131 = vcombine.high %v129, %v129
    %136 = vmatprep.subr.mxu0 0.0
    %137 = vmatpush1.msra.mxu0 %v43
    %138 = vmatprep.subr.mxu0 0.0
    %139 = vmatpush1.msra.mxu0 %v44
    %140 = vmatprep.subr.mxu0 0.0
    %141 = vmatpush1.msra.mxu0 %v45
    %142 = vmatprep.subr.mxu0 0.0
    %143 = vmatpush1.msra.mxu0 %v46
    %144 = vmatprep.subr.mxu0 0.0
    %145 = vmatpush1.msra.mxu0 %v47
    %146 = vmatprep.subr.mxu0 0.0
    %147 = vmatpush1.msra.mxu0 %v48
    %148 = vmatprep.subr.mxu0 0.0
    %149 = vmatpush1.msra.mxu0 %v49
    %150 = vmatprep.subr.mxu0 0.0
    %151 = vmatpush1.msra.mxu0 %v50
    %152 = vmatprep.subr.mxu0 0.0
    %153 = vmatpush1.msra.mxu0 %v51
    %154 = vmatprep.subr.mxu0 0.0
    %155 = vmatpush1.msra.mxu0 %v52
    %156 = vmatprep.subr.mxu0 0.0
    %157 = vmatpush1.msra.mxu0 %v53
    %158 = vmatprep.subr.mxu0 0.0
    %159 = vmatpush1.msra.mxu0 %v54
    %160 = vmatprep.subr.mxu0 0.0
    %161 = vmatpush1.msra.mxu0 %v55
    %162 = vmatprep.subr.mxu0 0.0
    %163 = vmatpush1.msra.mxu0 %v56
    %164 = vmatprep.subr.mxu0 0.0
    %165 = vmatpush1.msra.mxu0 %v57
    %166 = vmatprep.subr.mxu0 0.0
    %167 = vmatpush1.msra.mxu0 %v58
    %168 = vmatprep.subr.mxu0 0.0
    %169 = vmatpush1.msra.mxu0 %v59
    %170 = vmatprep.subr.mxu0 0.0
    %171 = vmatpush1.msra.mxu0 %v60
    %172 = vmatprep.subr.mxu0 0.0
    %173 = vmatpush1.msra.mxu0 %v61
    %174 = vmatprep.subr.mxu0 0.0
    %175 = vmatpush1.msra.mxu0 %v62
    %176 = vmatprep.subr.mxu0 0.0
    %177 = vmatpush1.msra.mxu0 %v63
    %178 = vmatprep.subr.mxu0 0.0
    %179 = vmatpush1.msra.mxu0 %v64
    %180 = vmatprep.subr.mxu0 0.0
    %181 = vmatpush1.msra.mxu0 %v65
    %182 = vmatprep.subr.mxu0 0.0
    %183 = vmatpush1.msra.mxu0 %v66
    %184 = vmatprep.subr.mxu0 0.0
    %185 = vmatpush1.msra.mxu0 %v67
    %186 = vmatprep.subr.mxu0 0.0
    %187 = vmatpush1.msra.mxu0 %v68
    %188 = vmatprep.subr.mxu0 0.0
    %189 = vmatpush1.msra.mxu0 %v69
    %190 = vmatprep.subr.mxu0 0.0
    %191 = vmatpush1.msra.mxu0 %v70
    %192 = vmatprep.subr.mxu0 0.0
    %193 = vmatpush1.msra.mxu0 %v71
    %194 = vmatprep.subr.mxu0 0.0
    %195 = vmatpush1.msra.mxu0 %v72
    %196 = vmatprep.subr.mxu0 0.0
    %197 = vmatpush1.msra.mxu0 %v73
    %198 = vmatprep.subr.mxu0 0.0
    %199 = vmatpush1.msra.mxu0 %v74
    %200 = vmatprep.mubr.f32.mxu0 %v130
    %201 = vmatmul.mubr.f32.gmra.mrb[0].mxu0 %v122
    %v202 = vpop.f32.mrb[0].mxu0
    %v203 = vadd.f32 %v112, %v202
    %v204 = vpop.f32.mrb[0].mxu0
    %205 = vdwg.mxu0
    %206 = vmatprep.subr.mxu0 0.0
    %207 = vmatpush1.msra.mxu0 %v75
    %208 = vmatprep.subr.mxu0 0.0
    %209 = vmatpush1.msra.mxu0 %v76
    %210 = vmatprep.subr.mxu0 0.0
    %211 = vmatpush1.msra.mxu0 %v77
    %212 = vmatprep.subr.mxu0 0.0
    %213 = vmatpush1.msra.mxu0 %v78
    %214 = vmatprep.subr.mxu0 0.0
    %215 = vmatpush1.msra.mxu0 %v79
    %216 = vmatprep.subr.mxu0 0.0
    %217 = vmatpush1.msra.mxu0 %v80
    %218 = vmatprep.subr.mxu0 0.0
    %219 = vmatpush1.msra.mxu0 %v81
    %220 = vmatprep.subr.mxu0 0.0
    %221 = vmatpush1.msra.mxu0 %v82
    %222 = vmatprep.subr.mxu0 0.0
    %223 = vmatpush1.msra.mxu0 %v83
    %224 = vmatprep.subr.mxu0 0.0
    %225 = vmatpush1.msra.mxu0 %v84
    %226 = vmatprep.subr.mxu0 0.0
    %227 = vmatpush1.msra.mxu0 %v85
    %228 = vmatprep.subr.mxu0 0.0
    %229 = vmatpush1.msra.mxu0 %v86
    %230 = vmatprep.subr.mxu0 0.0
    %231 = vmatpush1.msra.mxu0 %v87
    %232 = vmatprep.subr.mxu0 0.0
    %233 = vmatpush1.msra.mxu0 %v88
    %234 = vmatprep.subr.mxu0 0.0
    %235 = vmatpush1.msra.mxu0 %v89
    %236 = vmatprep.subr.mxu0 0.0
    %237 = vmatpush1.msra.mxu0 %v90
    %238 = vmatprep.subr.mxu0 0.0
    %239 = vmatpush1.msra.mxu0 %v91
    %240 = vmatprep.subr.mxu0 0.0
    %241 = vmatpush1.msra.mxu0 %v92
    %242 = vmatprep.subr.mxu0 0.0
    %243 = vmatpush1.msra.mxu0 %v93
    %244 = vmatprep.subr.mxu0 0.0
    %245 = vmatpush1.msra.mxu0 %v94
    %246 = vmatprep.subr.mxu0 0.0
    %247 = vmatpush1.msra.mxu0 %v95
    %248 = vmatprep.subr.mxu0 0.0
    %249 = vmatpush1.msra.mxu0 %v96
    %250 = vmatprep.subr.mxu0 0.0
    %251 = vmatpush1.msra.mxu0 %v97
    %252 = vmatprep.subr.mxu0 0.0
    %253 = vmatpush1.msra.mxu0 %v98
    %254 = vmatprep.subr.mxu0 0.0
    %255 = vmatpush1.msra.mxu0 %v99
    %256 = vmatprep.subr.mxu0 0.0
    %257 = vmatpush1.msra.mxu0 %v100
    %258 = vmatprep.subr.mxu0 0.0
    %259 = vmatpush1.msra.mxu0 %v101
    %260 = vmatprep.subr.mxu0 0.0
    %261 = vmatpush1.msra.mxu0 %v102
    %262 = vmatprep.subr.mxu0 0.0
    %263 = vmatpush1.msra.mxu0 %v103
    %264 = vmatprep.subr.mxu0 0.0
    %265 = vmatpush1.msra.mxu0 %v104
    %266 = vmatprep.subr.mxu0 0.0
    %267 = vmatpush1.msra.mxu0 %v105
    %268 = vmatprep.subr.mxu0 0.0
    %269 = vmatpush1.msra.mxu0 %v106
    %270 = vmatprep.mubr.f32.mxu0 %v131
    %271 = vmatmul.mubr.f32.gmra.mrb[0].mxu0 %v129
    %v272 = vpop.f32.mrb[0].mxu0
    %v273 = vadd.f32 %v203, %v272
    %v274 = vpop.f32.mrb[0].mxu0
    %275 = vdwg.mxu0
    %v276 = vld [vmem:[%s3] sm:$0xff]
    %v277 = vld [vmem:[%s3 + $0x8] sm:$0xff]
    %v278 = vld [vmem:[%s3 + $0x10] sm:$0xff]
    %v279 = vld [vmem:[%s3 + $0x18] sm:$0xff]
    %v280 = vld [vmem:[%s4] sm:$0x1]
    %v282 = vlaneseq
    %v283 = vshrl.u32 %v282, 7
    %v284 = vsub.s32 0, %v283
    %v285 = vrot.slane %v280, %v284
    %vm287 = vcmask 261120
    %v289 = vsel %vm287, %v273, 0
    %291 = vmatprep.subr.mxu0 0.0
    %292 = vmatpush1.msra.mxu0 %v276
    %293 = vmatprep.subr.mxu0 0.0
    %294 = vmatpush1.msra.mxu0 %v277
    %295 = vmatprep.subr.mxu0 0.0
    %296 = vmatpush1.msra.mxu0 %v278
    %297 = vmatprep.subr.mxu0 0.0
    %298 = vmatpush1.msra.mxu0 %v279
    %299 = vmatprep.subr.mxu0 0.0
    %300 = vmatpush1.msra.mxu0 0.0
    %301 = vmatprep.subr.mxu0 0.0
    %302 = vmatpush1.msra.mxu0 0.0
    %303 = vmatprep.subr.mxu0 0.0
    %304 = vmatpush1.msra.mxu0 0.0
    %305 = vmatprep.subr.mxu0 0.0
    %306 = vmatpush1.msra.mxu0 0.0
    %307 = vmatprep.subr.mxu0 0.0
    %308 = vmatpush1.msra.mxu0 0.0
    %309 = vmatprep.subr.mxu0 0.0
    %310 = vmatpush1.msra.mxu0 0.0
    %311 = vmatprep.subr.mxu0 0.0
    %312 = vmatpush1.msra.mxu0 0.0
    %313 = vmatprep.subr.mxu0 0.0
    %314 = vmatpush1.msra.mxu0 0.0
    %315 = vmatprep.subr.mxu0 0.0
    %316 = vmatpush1.msra.mxu0 0.0
    %317 = vmatprep.subr.mxu0 0.0
    %318 = vmatpush1.msra.mxu0 0.0
    %319 = vmatprep.subr.mxu0 0.0
    %320 = vmatpush1.msra.mxu0 0.0
    %321 = vmatprep.subr.mxu0 0.0
    %322 = vmatpush1.msra.mxu0 0.0
    %323 = vmatprep.subr.mxu0 0.0
    %324 = vmatpush1.msra.mxu0 0.0
    %325 = vmatprep.subr.mxu0 0.0
    %326 = vmatpush1.msra.mxu0 0.0
    %327 = vmatprep.subr.mxu0 0.0
    %328 = vmatpush1.msra.mxu0 0.0
    %329 = vmatprep.subr.mxu0 0.0
    %330 = vmatpush1.msra.mxu0 0.0
    %331 = vmatprep.subr.mxu0 0.0
    %332 = vmatpush1.msra.mxu0 0.0
    %333 = vmatprep.subr.mxu0 0.0
    %334 = vmatpush1.msra.mxu0 0.0
    %335 = vmatprep.subr.mxu0 0.0
    %336 = vmatpush1.msra.mxu0 0.0
    %337 = vmatprep.subr.mxu0 0.0
    %338 = vmatpush1.msra.mxu0 0.0
    %339 = vmatprep.subr.mxu0 0.0
    %340 = vmatpush1.msra.mxu0 0.0
    %341 = vmatprep.subr.mxu0 0.0
    %342 = vmatpush1.msra.mxu0 0.0
    %343 = vmatprep.subr.mxu0 0.0
    %344 = vmatpush1.msra.mxu0 0.0
    %345 = vmatprep.subr.mxu0 0.0
    %346 = vmatpush1.msra.mxu0 0.0
    %347 = vmatprep.subr.mxu0 0.0
    %348 = vmatpush1.msra.mxu0 0.0
    %349 = vmatprep.subr.mxu0 0.0
    %350 = vmatpush1.msra.mxu0 0.0
    %351 = vmatprep.subr.mxu0 0.0
    %352 = vmatpush1.msra.mxu0 0.0
    %353 = vmatprep.subr.mxu0 0.0
    %354 = vmatpush1.msra.mxu0 0.0
    %355 = vmatprep.mubr.f32.mxu0 0.0
    %356 = vmatmul.mubr.f32.gmra.mrb[0].mxu0 %v289
    %v357 = vpop.f32.mrb[0].mxu0
    %v358 = vadd.f32 %v285, %v357
    %v359 = vpop.f32.mrb[0].mxu0
    %360 = vdwg.mxu0
    %v361 = vmax.f32 %v358, 0.0
    %v362 = vld [vmem:[%s5] sm:$0xff]
    %v363 = vld [vmem:[%s6] sm:$0x1]
    %v365 = vlaneseq
    %v366 = vshrl.u32 %v365, 7
    %v367 = vsub.s32 0, %v366
    %v368 = vrot.slane %v363, %v367
    %vm370 = vcmask 64512
    %v372 = vsel %vm370, %v361, 0
    %374 = vmatprep.subr.mxu0 0.0
    %375 = vmatpush1.msra.mxu0 %v362
    %376 = vmatprep.subr.mxu0 0.0
    %377 = vmatpush1.msra.mxu0 0.0
    %378 = vmatprep.subr.mxu0 0.0
    %379 = vmatpush1.msra.mxu0 0.0
    %380 = vmatprep.subr.mxu0 0.0
    %381 = vmatpush1.msra.mxu0 0.0
    %382 = vmatprep.subr.mxu0 0.0
    %383 = vmatpush1.msra.mxu0 0.0
    %384 = vmatprep.subr.mxu0 0.0
    %385 = vmatpush1.msra.mxu0 0.0
    %386 = vmatprep.subr.mxu0 0.0
    %387 = vmatpush1.msra.mxu0 0.0
    %388 = vmatprep.subr.mxu0 0.0
    %389 = vmatpush1.msra.mxu0 0.0
    %390 = vmatprep.subr.mxu0 0.0
    %391 = vmatpush1.msra.mxu0 0.0
    %392 = vmatprep.subr.mxu0 0.0
    %393 = vmatpush1.msra.mxu0 0.0
    %394 = vmatprep.subr.mxu0 0.0
    %395 = vmatpush1.msra.mxu0 0.0
    %396 = vmatprep.subr.mxu0 0.0
    %397 = vmatpush1.msra.mxu0 0.0
    %398 = vmatprep.subr.mxu0 0.0
    %399 = vmatpush1.msra.mxu0 0.0
    %400 = vmatprep.subr.mxu0 0.0
    %401 = vmatpush1.msra.mxu0 0.0
    %402 = vmatprep.subr.mxu0 0.0
    %403 = vmatpush1.msra.mxu0 0.0
    %404 = vmatprep.subr.mxu0 0.0
    %405 = vmatpush1.msra.mxu0 0.0
    %406 = vmatprep.subr.mxu0 0.0
    %407 = vmatpush1.msra.mxu0 0.0
    %408 = vmatprep.subr.mxu0 0.0
    %409 = vmatpush1.msra.mxu0 0.0
    %410 = vmatprep.subr.mxu0 0.0
    %411 = vmatpush1.msra.mxu0 0.0
    %412 = vmatprep.subr.mxu0 0.0
    %413 = vmatpush1.msra.mxu0 0.0
    %414 = vmatprep.subr.mxu0 0.0
    %415 = vmatpush1.msra.mxu0 0.0
    %416 = vmatprep.subr.mxu0 0.0
    %417 = vmatpush1.msra.mxu0 0.0
    %418 = vmatprep.subr.mxu0 0.0
    %419 = vmatpush1.msra.mxu0 0.0
    %420 = vmatprep.subr.mxu0 0.0
    %421 = vmatpush1.msra.mxu0 0.0
    %422 = vmatprep.subr.mxu0 0.0
    %423 = vmatpush1.msra.mxu0 0.0
    %424 = vmatprep.subr.mxu0 0.0
    %425 = vmatpush1.msra.mxu0 0.0
    %426 = vmatprep.subr.mxu0 0.0
    %427 = vmatpush1.msra.mxu0 0.0
    %428 = vmatprep.subr.mxu0 0.0
    %429 = vmatpush1.msra.mxu0 0.0
    %430 = vmatprep.subr.mxu0 0.0
    %431 = vmatpush1.msra.mxu0 0.0
    %432 = vmatprep.subr.mxu0 0.0
    %433 = vmatpush1.msra.mxu0 0.0
    %434 = vmatprep.subr.mxu0 0.0
    %435 = vmatpush1.msra.mxu0 0.0
    %436 = vmatprep.subr.mxu0 0.0
    %437 = vmatpush1.msra.mxu0 0.0
    %438 = vmatprep.mubr.f32.mxu0 0.0
    %439 = vmatmul.mubr.f32.gmra.mrb[0].mxu0 %v372
    %v440 = vpop.f32.mrb[0].mxu0
    %v441 = vadd.f32 %v368, %v440
    %v442 = vpop.f32.mrb[0].mxu0
    %443 = vdwg.mxu0
    %vm444 = vcmask 58368
    %445 = vst.msk [vmem:[#allocation2] sm:$0x3] %vm444, %v441
    %v446 = vld [vmem:[%s7] sm:$0xff]
    %v447 = vld [vmem:[%s7 + $0x8] sm:$0xff]
    %v448 = vld [vmem:[%s7 + $0x10] sm:$0xff]
    %v449 = vld [vmem:[%s7 + $0x18] sm:$0xff]
    %v450 = vld [vmem:[%s8] sm:$0x1]
    %v452 = vlaneseq
    %v453 = vshrl.u32 %v452, 7
    %v454 = vsub.s32 0, %v453
    %v455 = vrot.slane %v450, %v454
    %457 = vmatprep.subr.mxu0 0.0
    %458 = vmatpush1.msra.mxu0 %v446
    %459 = vmatprep.subr.mxu0 0.0
    %460 = vmatpush1.msra.mxu0 %v447
    %461 = vmatprep.subr.mxu0 0.0
    %462 = vmatpush1.msra.mxu0 %v448
    %463 = vmatprep.subr.mxu0 0.0
    %464 = vmatpush1.msra.mxu0 %v449
    %465 = vmatprep.subr.mxu0 0.0
    %466 = vmatpush1.msra.mxu0 0.0
    %467 = vmatprep.subr.mxu0 0.0
    %468 = vmatpush1.msra.mxu0 0.0
    %469 = vmatprep.subr.mxu0 0.0
    %470 = vmatpush1.msra.mxu0 0.0
    %471 = vmatprep.subr.mxu0 0.0
    %472 = vmatpush1.msra.mxu0 0.0
    %473 = vmatprep.subr.mxu0 0.0
    %474 = vmatpush1.msra.mxu0 0.0
    %475 = vmatprep.subr.mxu0 0.0
    %476 = vmatpush1.msra.mxu0 0.0
    %477 = vmatprep.subr.mxu0 0.0
    %478 = vmatpush1.msra.mxu0 0.0
    %479 = vmatprep.subr.mxu0 0.0
    %480 = vmatpush1.msra.mxu0 0.0
    %481 = vmatprep.subr.mxu0 0.0
    %482 = vmatpush1.msra.mxu0 0.0
    %483 = vmatprep.subr.mxu0 0.0
    %484 = vmatpush1.msra.mxu0 0.0
    %485 = vmatprep.subr.mxu0 0.0
    %486 = vmatpush1.msra.mxu0 0.0
    %487 = vmatprep.subr.mxu0 0.0
    %488 = vmatpush1.msra.mxu0 0.0
    %489 = vmatprep.subr.mxu0 0.0
    %490 = vmatpush1.msra.mxu0 0.0
    %491 = vmatprep.subr.mxu0 0.0
    %492 = vmatpush1.msra.mxu0 0.0
    %493 = vmatprep.subr.mxu0 0.0
    %494 = vmatpush1.msra.mxu0 0.0
    %495 = vmatprep.subr.mxu0 0.0
    %496 = vmatpush1.msra.mxu0 0.0
    %497 = vmatprep.subr.mxu0 0.0
    %498 = vmatpush1.msra.mxu0 0.0
    %499 = vmatprep.subr.mxu0 0.0
    %500 = vmatpush1.msra.mxu0 0.0
    %501 = vmatprep.subr.mxu0 0.0
    %502 = vmatpush1.msra.mxu0 0.0
    %503 = vmatprep.subr.mxu0 0.0
    %504 = vmatpush1.msra.mxu0 0.0
    %505 = vmatprep.subr.mxu0 0.0
    %506 = vmatpush1.msra.mxu0 0.0
    %507 = vmatprep.subr.mxu0 0.0
    %508 = vmatpush1.msra.mxu0 0.0
    %509 = vmatprep.subr.mxu0 0.0
    %510 = vmatpush1.msra.mxu0 0.0
    %511 = vmatprep.subr.mxu0 0.0
    %512 = vmatpush1.msra.mxu0 0.0
    %513 = vmatprep.subr.mxu0 0.0
    %514 = vmatpush1.msra.mxu0 0.0
    %515 = vmatprep.subr.mxu0 0.0
    %516 = vmatpush1.msra.mxu0 0.0
    %517 = vmatprep.subr.mxu0 0.0
    %518 = vmatpush1.msra.mxu0 0.0
    %519 = vmatprep.subr.mxu0 0.0
    %520 = vmatpush1.msra.mxu0 0.0
    %521 = vmatprep.mubr.f32.mxu0 0.0
    %522 = vmatmul.mubr.f32.gmra.mrb[0].mxu0 %v289
    %v523 = vpop.f32.mrb[0].mxu0
    %v524 = vadd.f32 %v455, %v523
    %v525 = vpop.f32.mrb[0].mxu0
    %526 = vdwg.mxu0
    %v527 = vmax.f32 %v524, 0.0
    %v528 = vld [vmem:[%s9] sm:$0xff]
    %v529 = vld [vmem:[%s10] sm:$0x1]
    %v531 = vlaneseq
    %v532 = vshrl.u32 %v531, 7
    %v533 = vsub.s32 0, %v532
    %v534 = vrot.slane %v529, %v533
    %v537 = vsel %vm370, %v527, 0
    %539 = vmatprep.subr.mxu0 0.0
    %540 = vmatpush1.msra.mxu0 %v528
    %541 = vmatprep.subr.mxu0 0.0
    %542 = vmatpush1.msra.mxu0 0.0
    %543 = vmatprep.subr.mxu0 0.0
    %544 = vmatpush1.msra.mxu0 0.0
    %545 = vmatprep.subr.mxu0 0.0
    %546 = vmatpush1.msra.mxu0 0.0
    %547 = vmatprep.subr.mxu0 0.0
    %548 = vmatpush1.msra.mxu0 0.0
    %549 = vmatprep.subr.mxu0 0.0
    %550 = vmatpush1.msra.mxu0 0.0
    %551 = vmatprep.subr.mxu0 0.0
    %552 = vmatpush1.msra.mxu0 0.0
    %553 = vmatprep.subr.mxu0 0.0
    %554 = vmatpush1.msra.mxu0 0.0
    %555 = vmatprep.subr.mxu0 0.0
    %556 = vmatpush1.msra.mxu0 0.0
    %557 = vmatprep.subr.mxu0 0.0
    %558 = vmatpush1.msra.mxu0 0.0
    %559 = vmatprep.subr.mxu0 0.0
    %560 = vmatpush1.msra.mxu0 0.0
    %561 = vmatprep.subr.mxu0 0.0
    %562 = vmatpush1.msra.mxu0 0.0
    %563 = vmatprep.subr.mxu0 0.0
    %564 = vmatpush1.msra.mxu0 0.0
    %565 = vmatprep.subr.mxu0 0.0
    %566 = vmatpush1.msra.mxu0 0.0
    %567 = vmatprep.subr.mxu0 0.0
    %568 = vmatpush1.msra.mxu0 0.0
    %569 = vmatprep.subr.mxu0 0.0
    %570 = vmatpush1.msra.mxu0 0.0
    %571 = vmatprep.subr.mxu0 0.0
    %572 = vmatpush1.msra.mxu0 0.0
    %573 = vmatprep.subr.mxu0 0.0
    %574 = vmatpush1.msra.mxu0 0.0
    %575 = vmatprep.subr.mxu0 0.0
    %576 = vmatpush1.msra.mxu0 0.0
    %577 = vmatprep.subr.mxu0 0.0
    %578 = vmatpush1.msra.mxu0 0.0
    %579 = vmatprep.subr.mxu0 0.0
    %580 = vmatpush1.msra.mxu0 0.0
    %581 = vmatprep.subr.mxu0 0.0
    %582 = vmatpush1.msra.mxu0 0.0
    %583 = vmatprep.subr.mxu0 0.0
    %584 = vmatpush1.msra.mxu0 0.0
    %585 = vmatprep.subr.mxu0 0.0
    %586 = vmatpush1.msra.mxu0 0.0
    %587 = vmatprep.subr.mxu0 0.0
    %588 = vmatpush1.msra.mxu0 0.0
    %589 = vmatprep.subr.mxu0 0.0
    %590 = vmatpush1.msra.mxu0 0.0
    %591 = vmatprep.subr.mxu0 0.0
    %592 = vmatpush1.msra.mxu0 0.0
    %593 = vmatprep.subr.mxu0 0.0
    %594 = vmatpush1.msra.mxu0 0.0
    %595 = vmatprep.subr.mxu0 0.0
    %596 = vmatpush1.msra.mxu0 0.0
    %597 = vmatprep.subr.mxu0 0.0
    %598 = vmatpush1.msra.mxu0 0.0
    %599 = vmatprep.subr.mxu0 0.0
    %600 = vmatpush1.msra.mxu0 0.0
    %601 = vmatprep.subr.mxu0 0.0
    %602 = vmatpush1.msra.mxu0 0.0
    %603 = vmatprep.mubr.f32.mxu0 0.0
    %604 = vmatmul.mubr.f32.gmra.mrb[0].mxu0 %v537
    %v605 = vpop.f32.mrb[0].mxu0
    %v606 = vadd.f32 %v534, %v605
    %v607 = vpop.f32.mrb[0].mxu0
    %608 = vdwg.mxu0
    %609 = vst.msk [vmem:[#allocation4] sm:$0x3] %vm444, %v606
    // Predicated region
    $region46: #{tpu_custom_call.1} parent=1 // pred_check
      _
    $region47: #{tpu_custom_call.1} parent=1 // pred_check_branch
      %611 = sbr.rel (0) target = $region49
    $region48: #{tpu_custom_call.1} parent=1 // pred_region
      %s613 = ssub.s32 32, 32
      %614 = vsyncadd [#allocation3], %s613
      %s616 = sshll.u32 [#allocation2], 4
      %s617 = int_to_ptr.vmem [resolvable:$true] %s616
      %619 = dma.vmem_to_hbm [thread:$0]  %s617, 32, %s11, [#allocation3]
    $region49: #{tpu_custom_call.1} parent=1 // pred_fallthru
      _
    // Predicated region
    $region50: #{tpu_custom_call.1} parent=1 // pred_check
      _
    $region51: #{tpu_custom_call.1} parent=1 // pred_check_branch
      %621 = sbr.rel (0) target = $region53
    $region52: #{tpu_custom_call.1} parent=1 // pred_region
      %s623 = ssub.s32 32, 32
      %624 = vsyncadd [#allocation5], %s623
      %s626 = sshll.u32 [#allocation4], 4
      %s627 = int_to_ptr.vmem [resolvable:$true] %s626
      %629 = dma.vmem_to_hbm [thread:$0]  %s627, 32, %s12, [#allocation5]
    $region53: #{tpu_custom_call.1} parent=1 // pred_fallthru
      _
    // Predicated region
    $region54: #{tpu_custom_call.1} parent=1 // pred_check
      _
    $region55: #{tpu_custom_call.1} parent=1 // pred_check_branch
      %631 = sbr.rel (0) target = $region57
    $region56: #{tpu_custom_call.1} parent=1 // pred_region
      %632 = dma.done [#allocation3], 32
    $region57: #{tpu_custom_call.1} parent=1 // pred_fallthru
      _
    // Predicated region
    $region58: #{tpu_custom_call.1} parent=1 // pred_check
      _
    $region59: #{tpu_custom_call.1} parent=1 // pred_check_branch
      %634 = sbr.rel (0) target = $region61
    $region60: #{tpu_custom_call.1} parent=1 // pred_region
      %635 = dma.done [#allocation5], 32
    $region61: #{tpu_custom_call.1} parent=1 // pred_fallthru
      _
    %636 = vsyncpa [#allocation3], 1
    %637 = vsyncpa [#allocation5], 1

</llo_original>
